<compile_context>
chip_gen: v6e
topology: v6e:2x2x1
jax: 0.10.0
libtpu: 0.0.40
codegen_flags: <defaults>
</compile_context>

<pallas_src>
import functools

import jax
import jax.numpy as jnp
from jax.experimental import pallas as pl
from jax.experimental.pallas import tpu as pltpu

GAMMA = 2            # specialised: gamma == 2 -> VPU squares (general pow unsupported)
ALPHA = 0.25         # applied once on the reduced sums in the wrapper, not per element
LANE = 128
# 4096 rows * 128 lanes * 4 B = 2 MiB per f32 input per grid step.
TARGET_BLOCK_ROWS = 4096
VMEM_LIMIT_BYTES = 48 * 1024 * 1024


def _fold_add(o_ref, term, vals, block_rows):
    """Accumulate a (block_rows, LANE) slab into o_ref[0, term] (an (8, LANE) slab).

    block_rows % 8 == 0  -> pure-VPU fold of row-groups of 8 (no per-step cross-sublane
    reduce).  Otherwise (only possible when the block is the full, small array) fall
    back to one cross-sublane reduction into sublane 0.
    """
    if block_rows % 8 == 0:
        o_ref[0, term] += vals.reshape(block_rows // 8, 8, LANE).sum(axis=0)
    else:
        o_ref[0, term, 0:1, :] += jnp.sum(vals, axis=0, keepdims=True)


def _focal_sums_kernel(p_ref, t_ref, o_ref, *, steps, total_blocks, block_rows,
                       valid_rows_last, rows_ragged, has_overrange):
    """Accumulates, per parallel split c:
         o_ref[0, 0] += sum (1-p)^2 * t     * log(p)
         o_ref[0, 1] += sum  p^2    * (1-t) * log(1-p)
    The -alpha / -(1-alpha) scaling happens once in the wrapper."""
    c = pl.program_id(0)   # parallel split (v7x megacore); independent output slab per c
    j = pl.program_id(1)   # sequential reduction axis

    # The output block index depends only on c, so the tile is VMEM-resident across j:
    # use it directly as the accumulator (no scratch, no final copy).
    @pl.when(j == 0)
    def _():
        o_ref[...] = jnp.zeros_like(o_ref)

    p = p_ref[...].astype(jnp.float32)
    t = t_ref[...].astype(jnp.float32)
    one_m_p = 1.0 - p

    def accumulate(mask):
        # gamma == 2 -> plain multiplies on the VPU; only the two logs hit the EUP.
        a = (one_m_p * one_m_p) * (t * jnp.log(p))
        if mask is not None:
            a = jnp.where(mask, a, 0.0)
        _fold_add(o_ref, 0, a, block_rows)
        b = (p * p) * ((1.0 - t) * jnp.log(one_m_p))
        if mask is not None:
            b = jnp.where(mask, b, 0.0)
        _fold_add(o_ref, 1, b, block_rows)

    if rows_ragged or has_overrange:
        blk = c * steps + j                      # linear block index
        # Blocks strictly before the (possibly ragged) last block are always full.
        full_cutoff = total_blocks - 1 if rows_ragged else total_blocks

        @pl.when(blk < full_cutoff)
        def _():
            accumulate(None)

        if rows_ragged:
            # Only the single ragged block pays for the row mask (iota + compare + select).
            @pl.when(blk == total_blocks - 1)
            def _():
                rid = jax.lax.broadcasted_iota(jnp.int32, (block_rows, LANE), 0)
                accumulate(rid < valid_rows_last)
        # blk >= total_blocks (clamped duplicate from the uneven 2-way split): skip.
    else:
        accumulate(None)


def bce_focal_loss(predict, target, reduction="mean", *,
                   target_block_rows=TARGET_BLOCK_ROWS):
    """Pallas TPU implementation of BCEFocalLoss forward (mean/sum reduction).

    `target_block_rows` is a tuning/testing knob (must be a multiple of 8); the default
    gives 2 MiB f32 input blocks.
    """
    assert predict.shape == target.shape
    assert reduction in ("mean", "sum")
    # TODO(synk): reduction='none' (unreduced elementwise output) not implemented here.
    # TODO(synk): general gamma != 2 (lax.pow) not implemented; kernel specialises gamma=2.

    n = predict.size
    if n == 0:   # match torch semantics for empty inputs
        return jnp.float32(float("nan")) if reduction == "mean" else jnp.float32(0.0)

    p_flat = predict.reshape(-1)
    t_flat = target.reshape(-1)

    n_main = (n // LANE) * LANE        # 128-aligned prefix handled by the kernel
    tail = n - n_main                  # < 128 leftover elements handled in plain JAX

    # ----- ragged tail: tiny plain-JAX reduction (avoids any whole-array pad copy) ----
    if tail:
        pt = p_flat[n_main:].astype(jnp.float32)
        tt = t_flat[n_main:].astype(jnp.float32)
        one_m = 1.0 - pt
        sum_a = jnp.sum(one_m * one_m * tt * jnp.log(pt))
        sum_b = jnp.sum(pt * pt * (1.0 - tt) * jnp.log(one_m))
    else:
        sum_a = jnp.float32(0.0)
        sum_b = jnp.float32(0.0)

    # ----- main 128-aligned prefix: streaming Pallas reduction -----
    if n_main:
        rows = n_main // LANE
        p2d = p_flat[:n_main].reshape(rows, LANE)
        t2d = t_flat[:n_main].reshape(rows, LANE)

        # Either the full (small) array in one block, or fixed multiple-of-8 row blocks.
        block_rows = rows if rows <= target_block_rows else target_block_rows
        total_blocks = pl.cdiv(rows, block_rows)

        if total_blocks >= 2:
            num_splits = 2                       # always use both v7x TensorCores
            steps = pl.cdiv(total_blocks, 2)
        else:
            num_splits, steps = 1, 1

        rows_ragged = (rows % block_rows) != 0
        valid_rows_last = rows - (total_blocks - 1) * block_rows
        has_overrange = num_splits * steps > total_blocks   # odd block count, 2-way split

        last_blk = total_blocks - 1
        if has_overrange:
            in_idx = lambda c, j: (jnp.minimum(c * steps + j, last_blk), 0)
        else:
            in_idx = lambda c, j: (c * steps + j, 0)

        kernel = functools.partial(
            _focal_sums_kernel,
            steps=steps, total_blocks=total_blocks, block_rows=block_rows,
            valid_rows_last=valid_rows_last, rows_ragged=rows_ragged,
            has_overrange=has_overrange)

        partial = pl.pallas_call(
            kernel,
            out_shape=jax.ShapeDtypeStruct((num_splits, 2, 8, LANE), jnp.float32),
            grid_spec=pltpu.PrefetchScalarGridSpec(
                num_scalar_prefetch=0,
                grid=(num_splits, steps),
                in_specs=[pl.BlockSpec((block_rows, LANE), in_idx),
                          pl.BlockSpec((block_rows, LANE), in_idx)],
                out_specs=pl.BlockSpec((1, 2, 8, LANE), lambda c, j: (c, 0, 0, 0)),
            ),
            compiler_params=pltpu.CompilerParams(
                dimension_semantics=("parallel", "arbitrary"),
                vmem_limit_bytes=VMEM_LIMIT_BYTES),
        )(p2d, t2d)

        sum_a = sum_a + jnp.sum(partial[:, 0])
        sum_b = sum_b + jnp.sum(partial[:, 1])

    total = (-ALPHA) * sum_a - (1.0 - ALPHA) * sum_b
    if reduction == "mean":
        return total / jnp.float32(n)
    return total


def _reference(predict, target, reduction="mean"):
    p = predict.astype(jnp.float32)
    t = target.astype(jnp.float32)
    loss = (-ALPHA * (1 - p) ** GAMMA * t * jnp.log(p)
            - (1 - ALPHA) * p ** GAMMA * (1 - t) * jnp.log(1 - p))
    return jnp.mean(loss) if reduction == "mean" else jnp.sum(loss)


if __name__ == "__main__":
    key = jax.random.PRNGKey(0)
    k1, k2, k3, k4, k5, k6, k7, k8 = jax.random.split(key, 8)

    # 1) main check: NCHW probabilities in (0, 1), binary targets  (2048 elements)
    shape = (2, 4, 16, 16)
    predict = jax.random.uniform(k1, shape, jnp.float32, minval=1e-3, maxval=1.0 - 1e-3)
    target = (jax.random.uniform(k2, shape, jnp.float32) > 0.5).astype(jnp.float32)

    loss = bce_focal_loss(predict, target, reduction="mean")
    jax.block_until_ready(loss)
    ref = _reference(predict, target, reduction="mean")
    assert jnp.allclose(loss, ref, rtol=1e-4, atol=1e-6), (loss, ref)

    loss_sum = bce_focal_loss(predict, target, reduction="sum")
    jax.block_until_ready(loss_sum)
    ref_sum = _reference(predict, target, reduction="sum")
    assert jnp.allclose(loss_sum, ref_sum, rtol=1e-4, atol=1e-4), (loss_sum, ref_sum)

    # 2) ragged shape: exercises the 128-aligned-prefix + plain-JAX-tail path (no pad)
    shape2 = (2, 3, 7, 5)   # 210 elements -> 1 aligned row + 82-element tail
    predict2 = jax.random.uniform(k3, shape2, jnp.float32, minval=1e-3, maxval=1.0 - 1e-3)
    target2 = (jax.random.uniform(k4, shape2, jnp.float32) > 0.5).astype(jnp.float32)
    loss2 = bce_focal_loss(predict2, target2, reduction="mean")
    jax.block_until_ready(loss2)
    ref2 = _reference(predict2, target2, reduction="mean")
    assert jnp.allclose(loss2, ref2, rtol=1e-4, atol=1e-6), (loss2, ref2)

    # 3) tiny input smaller than one lane row: pure tail path, no pallas_call
    shape3 = (3, 5, 7)      # 105 elements
    predict3 = jax.random.uniform(k5, shape3, jnp.float32, minval=1e-3, maxval=1.0 - 1e-3)
    target3 = (jax.random.uniform(k6, shape3, jnp.float32) > 0.5).astype(jnp.float32)
    loss3 = bce_focal_loss(predict3, target3, reduction="mean")
    jax.block_until_ready(loss3)
    ref3 = _reference(predict3, target3, reduction="mean")
    assert jnp.allclose(loss3, ref3, rtol=1e-4, atol=1e-6), (loss3, ref3)

    # 4) small shape with a tiny block override: exercises the multi-block path,
    #    the always-on 2-way core split with an ODD block count (clamped duplicate
    #    block), and the ragged-last-block row mask.
    shape4 = (2, 4, 18, 16)  # 2304 elements -> 18 rows; block_rows=8 -> 3 blocks
    predict4 = jax.random.uniform(k7, shape4, jnp.float32, minval=1e-3, maxval=1.0 - 1e-3)
    target4 = (jax.random.uniform(k8, shape4, jnp.float32) > 0.5).astype(jnp.float32)
    loss4 = bce_focal_loss(predict4, target4, reduction="mean", target_block_rows=8)
    jax.block_until_ready(loss4)
    ref4 = _reference(predict4, target4, reduction="mean")
    assert jnp.allclose(loss4, ref4, rtol=1e-4, atol=1e-6), (loss4, ref4)

    print("KERNEL_OK")
</pallas_src>

<mosaic_0001>
module attributes {stable_mosaic.version = 11 : i64} {
  func.func @_focal_sums_kernel(%arg0: i32, %arg1: i32, %arg2: memref<16x128xf32, #tpu.memory_space<vmem>>, %arg3: memref<16x128xf32, #tpu.memory_space<vmem>>, %arg4: memref<1x2x8x128xf32, #tpu.memory_space<vmem>>) attributes {dimension_semantics = [#tpu.dimension_semantics<parallel>, #tpu.dimension_semantics<arbitrary>], iteration_bounds = array<i64: 1, 1>, scalar_prefetch = 0 : i64, scratch_operands = 0 : i64, tpu.core_type = #tpu.core_type<tc>, window_params = [{transform_indices = @transform_0, window_bounds = array<i64: 16, 128>}, {transform_indices = @transform_1, window_bounds = array<i64: 16, 128>}, {transform_indices = @transform_2, window_bounds = array<i64: 1, 2, 8, 128>}]} {
    %c0_i32 = arith.constant 0 : i32
    %0 = arith.cmpi eq, %arg1, %c0_i32 : i32
    %1 = arith.extui %0 : i1 to i32
    %c0_i32_0 = arith.constant 0 : i32
    %2 = arith.cmpi ne, %1, %c0_i32_0 : i32
    scf.if %2 {
      %cst_22 = arith.constant 0.000000e+00 : f32
      %33 = vector.broadcast %cst_22 : f32 to vector<1x2x8x128xf32>
      %c0_23 = arith.constant 0 : index
      %c0_24 = arith.constant 0 : index
      %c0_25 = arith.constant 0 : index
      %c0_26 = arith.constant 0 : index
      %34 = vector.load %arg4[%c0_23, %c0_24, %c0_25, %c0_26] : memref<1x2x8x128xf32, #tpu.memory_space<vmem>>, vector<1x2x8x128xf32>
      tpu.vector_store %arg4[%c0_23, %c0_24, %c0_25, %c0_26], %33 {strides = array<i32>} : memref<1x2x8x128xf32, #tpu.memory_space<vmem>>, vector<1x2x8x128xf32>,
    } else {
    }
    %c0 = arith.constant 0 : index
    %c0_1 = arith.constant 0 : index
    %3 = vector.load %arg2[%c0, %c0_1] : memref<16x128xf32, #tpu.memory_space<vmem>>, vector<16x128xf32>
    %c0_2 = arith.constant 0 : index
    %c0_3 = arith.constant 0 : index
    %4 = vector.load %arg3[%c0_2, %c0_3] : memref<16x128xf32, #tpu.memory_space<vmem>>, vector<16x128xf32>
    %cst = arith.constant 1.000000e+00 : f32
    %5 = vector.broadcast %cst : f32 to vector<16x128xf32>
    %6 = arith.subf %5, %3 : vector<16x128xf32>
    %7 = arith.mulf %6, %6 : vector<16x128xf32>
    %8 = math.log %3 : vector<16x128xf32>
    %9 = arith.mulf %4, %8 : vector<16x128xf32>
    %10 = arith.mulf %7, %9 : vector<16x128xf32>
    %c0_4 = arith.constant 0 : index
    %c0_5 = arith.constant 0 : index
    %c0_6 = arith.constant 0 : index
    %c0_7 = arith.constant 0 : index
    %11 = vector.load %arg4[%c0_4, %c0_5, %c0_6, %c0_7] : memref<1x2x8x128xf32, #tpu.memory_space<vmem>>, vector<1x1x8x128xf32>
    %12 = vector.shape_cast %11 : vector<1x1x8x128xf32> to vector<8x128xf32>
    %13 = vector.shape_cast %10 : vector<16x128xf32> to vector<2x8x128xf32>
    %cst_8 = arith.constant dense<0.000000e+00> : vector<8x128xf32>
    %14 = vector.multi_reduction <add>, %13, %cst_8 [0] : vector<2x8x128xf32> to vector<8x128xf32>
    %15 = arith.addf %12, %14 : vector<8x128xf32>
    %c0_9 = arith.constant 0 : index
    %c0_10 = arith.constant 0 : index
    %c0_11 = arith.constant 0 : index
    %c0_12 = arith.constant 0 : index
    %16 = vector.load %arg4[%c0_9, %c0_10, %c0_11, %c0_12] : memref<1x2x8x128xf32, #tpu.memory_space<vmem>>, vector<1x1x8x128xf32>
    %17 = vector.shape_cast %16 : vector<1x1x8x128xf32> to vector<8x128xf32>
    %18 = vector.shape_cast %15 : vector<8x128xf32> to vector<1x1x8x128xf32>
    tpu.vector_store %arg4[%c0_9, %c0_10, %c0_11, %c0_12], %18 {strides = array<i32>} : memref<1x2x8x128xf32, #tpu.memory_space<vmem>>, vector<1x1x8x128xf32>,
    %19 = arith.mulf %3, %3 : vector<16x128xf32>
    %cst_13 = arith.constant 1.000000e+00 : f32
    %20 = vector.broadcast %cst_13 : f32 to vector<16x128xf32>
    %21 = arith.subf %20, %4 : vector<16x128xf32>
    %22 = math.log %6 : vector<16x128xf32>
    %23 = arith.mulf %21, %22 : vector<16x128xf32>
    %24 = arith.mulf %19, %23 : vector<16x128xf32>
    %c0_14 = arith.constant 0 : index
    %c1 = arith.constant 1 : index
    %c0_15 = arith.constant 0 : index
    %c0_16 = arith.constant 0 : index
    %25 = vector.load %arg4[%c0_14, %c1, %c0_15, %c0_16] : memref<1x2x8x128xf32, #tpu.memory_space<vmem>>, vector<1x1x8x128xf32>
    %26 = vector.shape_cast %25 : vector<1x1x8x128xf32> to vector<8x128xf32>
    %27 = vector.shape_cast %24 : vector<16x128xf32> to vector<2x8x128xf32>
    %cst_17 = arith.constant dense<0.000000e+00> : vector<8x128xf32>
    %28 = vector.multi_reduction <add>, %27, %cst_17 [0] : vector<2x8x128xf32> to vector<8x128xf32>
    %29 = arith.addf %26, %28 : vector<8x128xf32>
    %c0_18 = arith.constant 0 : index
    %c1_19 = arith.constant 1 : index
    %c0_20 = arith.constant 0 : index
    %c0_21 = arith.constant 0 : index
    %30 = vector.load %arg4[%c0_18, %c1_19, %c0_20, %c0_21] : memref<1x2x8x128xf32, #tpu.memory_space<vmem>>, vector<1x1x8x128xf32>
    %31 = vector.shape_cast %30 : vector<1x1x8x128xf32> to vector<8x128xf32>
    %32 = vector.shape_cast %29 : vector<8x128xf32> to vector<1x1x8x128xf32>
    tpu.vector_store %arg4[%c0_18, %c1_19, %c0_20, %c0_21], %32 {strides = array<i32>} : memref<1x2x8x128xf32, #tpu.memory_space<vmem>>, vector<1x1x8x128xf32>,
    return
  }
  func.func @transform_0(%arg0: i32, %arg1: i32) -> (i32, i32) {
    %c1_i32 = arith.constant 1 : i32
    %0 = arith.muli %arg0, %c1_i32 : i32
    %1 = arith.addi %0, %arg1 : i32
    %c0_i32 = arith.constant 0 : i32
    %c0_i32_0 = arith.constant 0 : i32
    return %1, %c0_i32 : i32, i32
  }
  func.func @transform_1(%arg0: i32, %arg1: i32) -> (i32, i32) {
    %c1_i32 = arith.constant 1 : i32
    %0 = arith.muli %arg0, %c1_i32 : i32
    %1 = arith.addi %0, %arg1 : i32
    %c0_i32 = arith.constant 0 : i32
    %c0_i32_0 = arith.constant 0 : i32
    return %1, %c0_i32 : i32, i32
  }
  func.func @transform_2(%arg0: i32, %arg1: i32) -> (i32, i32, i32, i32) {
    %c0_i32 = arith.constant 0 : i32
    %c0_i32_0 = arith.constant 0 : i32
    %c0_i32_1 = arith.constant 0 : i32
    %c0_i32_2 = arith.constant 0 : i32
    return %arg0, %c0_i32, %c0_i32_0, %c0_i32_1 : i32, i32, i32, i32
  }
}

</mosaic_0001>

<llo_original>
// kernel: tpu_custom_call.1
$region0: #{tpu_custom_call.1}
  #allocation0 [shape = 'u32[]', space=smem, size = 0x4, offset = 0x4, fixed_abs, tag = 'smem constant byte address 0x4 - core index']
  #allocation1 [shape = 'u32[144,128]{1,0:T(1,128)}', space=vmem, size = 0x12000, scoped, tag = 'internal scratch']
  %s0 = inlined_call_operand.hbm [shape: f32[16,128], index: 0, kind: input, shape index: {}]
  %s1 = inlined_call_operand.hbm [shape: f32[16,128], index: 1, kind: input, shape index: {}]
  %s2 = inlined_call_operand.hbm [shape: f32[1,2,8,128], index: 2, kind: output, shape index: {}]
  %s3 = sld [smem:[#allocation0]]
  $region30: #{tpu_custom_call.1} parent=0
    _
  %s5 = ssub.s32 1, %s3
  %s6 = scalar_select 0, %s5, %s3
  $region1: #{tpu_custom_call.1} parent=0
    #allocation2 [shape = 'u8[8192]{0}', space=vmem, size = 0x2000, scoped, tag = 'input window, operand 0, single buffered']
    #allocation3 [shape = 's32[1]{0}', space=sflag, size = 0x4, scoped, tag = 'scoped memory for tpu_custom_call.1']
    #allocation4 [shape = 's32[1]{0}', space=sflag, size = 0x4, scoped, tag = 'scoped memory for tpu_custom_call.1']
    #allocation5 [shape = 'u8[8192]{0}', space=vmem, size = 0x2000, scoped, tag = 'input window, operand 1, single buffered']
    #allocation6 [shape = 's32[1]{0}', space=sflag, size = 0x4, scoped, tag = 'scoped memory for tpu_custom_call.1']
    #allocation7 [shape = 'u8[8192]{0}', space=vmem, size = 0x2000, scoped, tag = 'output window, operand 0, single buffered']
    %7 = vsyncpa [#allocation3], 0
    %8 = vsyncpa [#allocation6], 0
    %9 = vsyncpa [#allocation4], 0
    // Predicated region
    $region2: #{tpu_custom_call.1} parent=1 // pred_check
      _
    $region3: #{tpu_custom_call.1} parent=1 // pred_check_branch
      %11 = sbr.rel (0) target = $region5
    $region4: #{tpu_custom_call.1} parent=1 // pred_region
      %s12 = sadd.s32 0, 0
      %s13 = smul.u32 2, %s12
      %s15 = ssub.s32 256, 256
      %16 = vsyncadd [#allocation3], %s15
      %s17 = smul.addr %s13, 128
      %s18 = scalar_lea.hbm %s0, %s17
      %s19 = sshll.u32 [#allocation2], 4
      %s20 = int_to_ptr.vmem [resolvable:$true] %s19
      %25 = dma.hbm_to_vmem [thread:$0]  %s18, 256, %s20, [#allocation3], 128, 128, 8
    $region5: #{tpu_custom_call.1} parent=1 // pred_fallthru
      _
    // Predicated region
    $region6: #{tpu_custom_call.1} parent=1 // pred_check
      _
    $region7: #{tpu_custom_call.1} parent=1 // pred_check_branch
      %27 = sbr.rel (0) target = $region9
    $region8: #{tpu_custom_call.1} parent=1 // pred_region
      %s28 = sadd.s32 0, 0
      %s29 = smul.u32 2, %s28
      %s31 = ssub.s32 256, 256
      %32 = vsyncadd [#allocation6], %s31
      %s33 = smul.addr %s29, 128
      %s34 = scalar_lea.hbm %s1, %s33
      %s35 = sshll.u32 [#allocation5], 4
      %s36 = int_to_ptr.vmem [resolvable:$true] %s35
      %41 = dma.hbm_to_vmem [thread:$0]  %s34, 256, %s36, [#allocation6], 128, 128, 8
    $region9: #{tpu_custom_call.1} parent=1 // pred_fallthru
      _
    // Predicated region
    $region10: #{tpu_custom_call.1} parent=1 // pred_check
      _
    $region11: #{tpu_custom_call.1} parent=1 // pred_check_branch
      %43 = sbr.rel (0) target = $region13
    $region12: #{tpu_custom_call.1} parent=1 // pred_region
      %44 = dma.done [#allocation3], 256
    $region13: #{tpu_custom_call.1} parent=1 // pred_fallthru
      _
    // Predicated region
    $region14: #{tpu_custom_call.1} parent=1 // pred_check
      _
    $region15: #{tpu_custom_call.1} parent=1 // pred_check_branch
      %46 = sbr.rel (0) target = $region17
    $region16: #{tpu_custom_call.1} parent=1 // pred_region
      %47 = dma.done [#allocation6], 256
    $region17: #{tpu_custom_call.1} parent=1 // pred_fallthru
      _
    %s48 = sadd.s32 0, 0
    %s49 = smul.u32 2, %s48
    %s50 = sadd.s32 0, 0
    %s51 = smul.u32 2, %s50
    %p52 = scmp.eq.s32.totalorder 0, 0
    // Predicated region
    $region18: #{tpu_custom_call.1} parent=1 // pred_check
      %p53 = pneg %p52
    $region19: #{tpu_custom_call.1} parent=1 // pred_check_branch
      %55 = sbr.rel (%p53) target = $region21
    $region20: #{tpu_custom_call.1} parent=1 // pred_region
      %56 = vst [vmem:[#allocation7] sm:$0xff] 0.0
      %57 = vst [vmem:[#allocation7 + $0x8] sm:$0xff] 0.0
    $region21: #{tpu_custom_call.1} parent=1 // pred_fallthru
      _
    %v58 = vld [vmem:[#allocation2] sm:$0xff]
    %v59 = vld [vmem:[#allocation2 + $0x8] sm:$0xff]
    %v60 = vld [vmem:[#allocation5] sm:$0xff]
    %v61 = vld [vmem:[#allocation5 + $0x8] sm:$0xff]
    %v62 = vsub.f32 1.0, %v58
    %v63 = vsub.f32 1.0, %v59
    %v64 = vmul.f32 %v62, %v62
    %v65 = vmul.f32 %v63, %v63
    %v66 = vlog2.pop %v58
    %v67 = vmul.f32 %v66, 0.6931472
    %v68 = vlog2.pop %v59
    %v69 = vmul.f32 %v68, 0.6931472
    %v70 = vmul.f32 %v60, %v67
    %v71 = vmul.f32 %v61, %v69
    %v72 = vmul.f32 %v64, %v70
    %v73 = vmul.f32 %v65, %v71
    %v74 = vld [vmem:[#allocation7] sm:$0xff]
    %v75 = vadd.f32 %v72, %v73
    %v76 = vadd.f32 %v74, %v75
    %77 = vst [vmem:[#allocation7] sm:$0xff] %v76
    %v78 = vmul.f32 %v58, %v58
    %v79 = vmul.f32 %v59, %v59
    %v80 = vsub.f32 1.0, %v60
    %v81 = vsub.f32 1.0, %v61
    %v82 = vlog2.pop %v62
    %v83 = vmul.f32 %v82, 0.6931472
    %v84 = vlog2.pop %v63
    %v85 = vmul.f32 %v84, 0.6931472
    %v86 = vmul.f32 %v80, %v83
    %v87 = vmul.f32 %v81, %v85
    %v88 = vmul.f32 %v78, %v86
    %v89 = vmul.f32 %v79, %v87
    %s90 = scalar_lea.vmem [#allocation7], 8
    %v91 = vld [vmem:[%s90] sm:$0xff]
    %v92 = vadd.f32 %v88, %v89
    %v93 = vadd.f32 %v91, %v92
    %94 = vst [vmem:[%s90] sm:$0xff] %v93
    // Predicated region
    $region22: #{tpu_custom_call.1} parent=1 // pred_check
      _
    $region23: #{tpu_custom_call.1} parent=1 // pred_check_branch
      %96 = sbr.rel (0) target = $region25
    $region24: #{tpu_custom_call.1} parent=1 // pred_region
      %s98 = ssub.s32 256, 256
      %99 = vsyncadd [#allocation4], %s98
      %s100 = sshll.u32 [#allocation7], 4
      %s101 = int_to_ptr.vmem [resolvable:$true] %s100
      %106 = dma.vmem_to_hbm [thread:$0]  %s101, 256, %s2, [#allocation4], 128, 128, 8
    $region25: #{tpu_custom_call.1} parent=1 // pred_fallthru
      _
    // Predicated region
    $region26: #{tpu_custom_call.1} parent=1 // pred_check
      _
    $region27: #{tpu_custom_call.1} parent=1 // pred_check_branch
      %108 = sbr.rel (0) target = $region29
    $region28: #{tpu_custom_call.1} parent=1 // pred_region
      %109 = dma.done [#allocation4], 256
    $region29: #{tpu_custom_call.1} parent=1 // pred_fallthru
      _
    %110 = vsyncpa [#allocation3], 1
    %111 = vsyncpa [#allocation6], 1
    %112 = vsyncpa [#allocation4], 1

</llo_original>
